<compile_context>
chip_gen: v5e
topology: v5e:2x2
jax: 0.10.0
libtpu: 0.0.40
codegen_flags: <defaults>
</compile_context>

<pallas_src>
import numpy as np
import jax
import jax.numpy as jnp
from jax.experimental import pallas as pl
from jax.experimental.pallas import tpu as pltpu


def _round_up(x: int, m: int) -> int:
    return ((x + m - 1) // m) * m


# ----------------------------- Pallas kernel ------------------------------ #

def _xgb_predict_kernel(x_ref, featsel_ref, thr_ref, leafval_ref, o_ref):
    # x: (rt, D) rows-on-sublanes.  The first contraction puts the rows on the
    # lane axis, so all later intermediates and the output store are lane-dense.
    x = x_ref[...]                                     # (rt, D), X's dtype
    fs = featsel_ref[...]                              # (L*T, D) one-hot, f32
    if fs.dtype != x.dtype:
        fs = fs.astype(x.dtype)                        # one-hot -> exact in bf16

    # 1. per-split feature pick, transposed: (L*T, D) . (rt, D)^T -> (L*T, rt)
    xs_t = jax.lax.dot_general(
        fs, x,
        dimension_numbers=(((1,), (1,)), ((), ())),
        preferred_element_type=jnp.float32)            # (L*T, rt) f32

    # 2. split decisions.  Rows are level-major: rows [l*T, (l+1)*T) hold bit l
    #    (weight 2^l) of every tree -> each level is an aligned sublane group.
    bits = xs_t > thr_ref[...]                         # (L*T, rt) bool

    # 3. per-tree leaf-value select tree (replaces pow2 matmul + one-hot + reduce).
    #    leaf index of tree t = sum_l bits[l*T + t] * 2^l; walk it with 2^L - 1
    #    full-vreg (T, rt) selects against (T, 1) leaf-value columns.
    T, nleaf = leafval_ref.shape
    L = nleaf.bit_length() - 1
    lv = leafval_ref[...]                              # (T, 2^L) f32

    def pick(level, offset):
        if level == L:
            return lv[:, offset:offset + 1]            # (T, 1) column
        b = bits[level * T:(level + 1) * T]            # (T, rt) sublane-aligned slice
        return jnp.where(b,
                         pick(level + 1, offset + (1 << level)),
                         pick(level + 1, offset))

    v = pick(0, 0)                                     # (T, rt) leaf value per (tree,row)

    # 4. sum over trees (sublane / XLU reduce) -> lane-dense (1, rt) store.
    o_ref[0] = jnp.sum(v, axis=0, keepdims=True).astype(o_ref.dtype)


# ------------------------------ wrapper ------------------------------------ #

class XGBoostRegressorPallas:
    """Deterministic synthetic stand-in for xgb.XGBRegressor.predict on TPU."""

    def __init__(self, num_features: int, num_trees: int = 8, depth: int = 3,
                 base_score: float = 0.5, seed: int = 0):
        D, T, L = num_features, num_trees, depth
        S = T * L                  # total number of splits (oblivious trees)
        NLEAF = 1 << L             # leaves per tree

        rng = np.random.default_rng(seed)
        feat_idx = rng.integers(0, D, size=(T, L))                    # split feature ids
        thresholds = rng.standard_normal((T, L)).astype(np.float32)   # split thresholds
        leaf_values = (0.1 * rng.standard_normal((T, NLEAF))).astype(np.float32)
        # fold the base score evenly into every tree's leaves
        leaf_values += np.float32(base_score) / np.float32(T)

        # Level-major row ordering (row = l*T + t): inside the kernel each level's
        # bits form a (T, rt) sublane-aligned group (T=8 -> exactly one group).
        featsel_t = np.zeros((S, D), dtype=np.float32)   # one-hot feature selector^T
        thr = np.zeros((S, 1), dtype=np.float32)
        for l in range(L):
            for t in range(T):
                r = l * T + t
                featsel_t[r, feat_idx[t, l]] = 1.0
                thr[r, 0] = thresholds[t, l]

        self.D, self.T, self.L, self.S, self.NLEAF = D, T, L, S, NLEAF
        # NOTE: thresholds / leaf values stay f32 so comparisons remain exact even
        # when X itself is bf16 (the one-hot featsel is exact in any float dtype).
        self._params = (
            jnp.asarray(featsel_t),                     # (S, D)
            jnp.asarray(thr),                           # (S, 1)
            jnp.asarray(leaf_values),                   # (T, NLEAF)
        )

    def __call__(self, X: jax.Array, *, row_tile: int = 4096) -> jax.Array:
        N, D = X.shape
        assert D == self.D
        featsel_t, thr, leafval = self._params
        S, T, NLEAF = self.S, self.T, self.NLEAF

        # Row tile: multiple of 128 (lane-dense output), capped by row_tile, and
        # clamped so the grid has >= 2 steps whenever N allows it (v7x has two
        # TensorCores fed only by the parallel grid axis).
        rt = max(128, min(_round_up(int(row_tile), 128),
                          _round_up((N + 1) // 2, 128)))
        n_tiles = -(-N // rt)      # cdiv; ragged tail handled by Pallas block masking

        itemsize = jnp.dtype(X.dtype).itemsize
        cost = pl.CostEstimate(
            flops=int(2 * N * S * D + N * (S + 4 * T * NLEAF)),
            transcendentals=0,
            bytes_accessed=int(N * D * itemsize + N * itemsize
                               + (S * D + S + T * NLEAF) * 4),
        )

        out = pl.pallas_call(
            _xgb_predict_kernel,
            out_shape=jax.ShapeDtypeStruct((n_tiles, 1, rt), X.dtype),
            grid=(n_tiles,),
            in_specs=[
                pl.BlockSpec((rt, D), lambda i: (i, 0)),      # X row tile (ragged tail masked)
                pl.BlockSpec((S, D), lambda i: (0, 0)),       # featsel^T   (constant)
                pl.BlockSpec((S, 1), lambda i: (0, 0)),       # thresholds  (constant)
                pl.BlockSpec((T, NLEAF), lambda i: (0, 0)),   # leaf values (constant)
            ],
            out_specs=pl.BlockSpec((1, 1, rt), lambda i: (i, 0, 0)),
            compiler_params=pltpu.CompilerParams(
                dimension_semantics=("parallel",),
                vmem_limit_bytes=32 * 1024 * 1024),
            cost_estimate=cost,
        )(X, featsel_t, thr, leafval)

        # (n_tiles, 1, rt) is lane-dense in the kernel; plumb back to (N, 1).
        # Tail rows past N are meaningless (masked ragged block) and sliced off.
        return out.reshape(n_tiles * rt, 1)[:N]

    # plain-JAX reference (gather-based formulation, same math) for verification
    def reference(self, X: jax.Array) -> jax.Array:
        featsel_t, thr, leafval = self._params
        T, L = self.T, self.L
        xf = X.astype(jnp.float32)
        xs = xf @ featsel_t.T                                       # (N, L*T)
        bits = (xs > thr.T).astype(jnp.int32)                       # (N, L*T)
        idx = sum(bits[:, l * T:(l + 1) * T] * (1 << l) for l in range(L))  # (N, T)
        vals = leafval[jnp.arange(T)[None, :], idx]                 # (N, T)
        return vals.sum(axis=1, keepdims=True).astype(X.dtype)      # (N, 1)


# -------------------------------- demo ------------------------------------- #

if __name__ == "__main__":
    key = jax.random.PRNGKey(0)
    k1, k2, k3 = jax.random.split(key, 3)
    D = 32

    model = XGBoostRegressorPallas(num_features=D, num_trees=8, depth=3,
                                   base_score=0.5, seed=0)

    # ragged N with the default (large) row tile -> rt clamps to 128, 2 tiles
    N1 = 200
    X1 = jax.random.normal(k1, (N1, D), dtype=jnp.float32)
    y1 = jax.block_until_ready(model(X1))
    assert y1.shape == (N1, 1) and y1.dtype == X1.dtype
    np.testing.assert_allclose(np.asarray(y1), np.asarray(model.reference(X1)),
                               rtol=1e-5, atol=1e-5)

    # multi-tile grid with explicit small tile + ragged tail
    N2 = 300
    X2 = jax.random.normal(k2, (N2, D), dtype=jnp.float32)
    y2 = jax.block_until_ready(model(X2, row_tile=128))
    assert y2.shape == (N2, 1) and y2.dtype == X2.dtype
    np.testing.assert_allclose(np.asarray(y2), np.asarray(model.reference(X2)),
                               rtol=1e-5, atol=1e-5)

    # bf16 input exercises the bf16-MXU path (one-hot feature pick is exact in bf16)
    N3 = 160
    X3 = jax.random.normal(k3, (N3, D), dtype=jnp.bfloat16)
    y3 = jax.block_until_ready(model(X3))
    assert y3.shape == (N3, 1) and y3.dtype == X3.dtype
    np.testing.assert_allclose(np.asarray(y3.astype(jnp.float32)),
                               np.asarray(model.reference(X3).astype(jnp.float32)),
                               rtol=2e-2, atol=2e-2)

    print("KERNEL_OK")
</pallas_src>

<mosaic_0001>
module attributes {stable_mosaic.version = 11 : i64} {
  func.func @_xgb_predict_kernel(%arg0: i32, %arg1: memref<128x32xf32, #tpu.memory_space<vmem>>, %arg2: memref<24x32xf32, #tpu.memory_space<vmem>>, %arg3: memref<24x1xf32, #tpu.memory_space<vmem>>, %arg4: memref<8x8xf32, #tpu.memory_space<vmem>>, %arg5: memref<1x1x128xf32, #tpu.memory_space<vmem>>) attributes {dimension_semantics = [#tpu.dimension_semantics<parallel>], iteration_bounds = array<i64: 2>, scalar_prefetch = 0 : i64, scratch_operands = 0 : i64, tpu.core_type = #tpu.core_type<tc>, window_params = [{transform_indices = @transform_0, window_bounds = array<i64: 128, 32>}, {pipeline_mode = #tpu.pipeline_mode<synchronous>, transform_indices = @transform_1, window_bounds = array<i64: 24, 32>}, {pipeline_mode = #tpu.pipeline_mode<synchronous>, transform_indices = @transform_2, window_bounds = array<i64: 24, 1>}, {pipeline_mode = #tpu.pipeline_mode<synchronous>, transform_indices = @transform_3, window_bounds = array<i64: 8, 8>}, {transform_indices = @transform_4, window_bounds = array<i64: 1, 1, 128>}]} {
    %c0 = arith.constant 0 : index
    %c0_0 = arith.constant 0 : index
    %0 = vector.load %arg1[%c0, %c0_0] : memref<128x32xf32, #tpu.memory_space<vmem>>, vector<128x32xf32>
    %c0_1 = arith.constant 0 : index
    %c0_2 = arith.constant 0 : index
    %1 = vector.load %arg2[%c0_1, %c0_2] : memref<24x32xf32, #tpu.memory_space<vmem>>, vector<24x32xf32>
    %cst = arith.constant dense<0.000000e+00> : vector<24x128xf32>
    %2 = tpu.matmul %1, %0, %cst {dimension_numbers = #tpu.dot_dimension_numbers<[1], [1], [0], [0], [0, 0, 1, 0], [], []>} : vector<24x32xf32>, vector<128x32xf32>, vector<24x128xf32> -> vector<24x128xf32>
    %c0_3 = arith.constant 0 : index
    %c0_4 = arith.constant 0 : index
    %3 = vector.load %arg3[%c0_3, %c0_4] : memref<24x1xf32, #tpu.memory_space<vmem>>, vector<24x1xf32>
    %4 = vector.broadcast %3 : vector<24x1xf32> to vector<24x128xf32>
    %5 = arith.cmpf ogt, %2, %4 : vector<24x128xf32>
    %c0_5 = arith.constant 0 : index
    %c0_6 = arith.constant 0 : index
    %6 = vector.load %arg4[%c0_5, %c0_6] : memref<8x8xf32, #tpu.memory_space<vmem>>, vector<8x8xf32>
    %7 = vector.extract_strided_slice %5 {offsets = [0, 0], sizes = [8, 128], strides = [1, 1]} : vector<24x128xi1> to vector<8x128xi1>
    %8 = vector.extract_strided_slice %5 {offsets = [8, 0], sizes = [8, 128], strides = [1, 1]} : vector<24x128xi1> to vector<8x128xi1>
    %9 = vector.extract_strided_slice %5 {offsets = [16, 0], sizes = [8, 128], strides = [1, 1]} : vector<24x128xi1> to vector<8x128xi1>
    %10 = vector.extract_strided_slice %6 {offsets = [0, 7], sizes = [8, 1], strides = [1, 1]} : vector<8x8xf32> to vector<8x1xf32>
    %11 = vector.extract_strided_slice %6 {offsets = [0, 3], sizes = [8, 1], strides = [1, 1]} : vector<8x8xf32> to vector<8x1xf32>
    %12 = vector.shape_cast %10 : vector<8x1xf32> to vector<8x1xf32>
    %13 = vector.broadcast %12 : vector<8x1xf32> to vector<8x128xf32>
    %14 = vector.shape_cast %11 : vector<8x1xf32> to vector<8x1xf32>
    %15 = vector.broadcast %14 : vector<8x1xf32> to vector<8x128xf32>
    %16 = arith.select %9, %13, %15 : vector<8x128xi1>, vector<8x128xf32>
    %17 = vector.extract_strided_slice %5 {offsets = [16, 0], sizes = [8, 128], strides = [1, 1]} : vector<24x128xi1> to vector<8x128xi1>
    %18 = vector.extract_strided_slice %6 {offsets = [0, 5], sizes = [8, 1], strides = [1, 1]} : vector<8x8xf32> to vector<8x1xf32>
    %19 = vector.extract_strided_slice %6 {offsets = [0, 1], sizes = [8, 1], strides = [1, 1]} : vector<8x8xf32> to vector<8x1xf32>
    %20 = vector.shape_cast %18 : vector<8x1xf32> to vector<8x1xf32>
    %21 = vector.broadcast %20 : vector<8x1xf32> to vector<8x128xf32>
    %22 = vector.shape_cast %19 : vector<8x1xf32> to vector<8x1xf32>
    %23 = vector.broadcast %22 : vector<8x1xf32> to vector<8x128xf32>
    %24 = arith.select %17, %21, %23 : vector<8x128xi1>, vector<8x128xf32>
    %25 = arith.select %8, %16, %24 : vector<8x128xi1>, vector<8x128xf32>
    %26 = vector.extract_strided_slice %5 {offsets = [8, 0], sizes = [8, 128], strides = [1, 1]} : vector<24x128xi1> to vector<8x128xi1>
    %27 = vector.extract_strided_slice %5 {offsets = [16, 0], sizes = [8, 128], strides = [1, 1]} : vector<24x128xi1> to vector<8x128xi1>
    %28 = vector.extract_strided_slice %6 {offsets = [0, 6], sizes = [8, 1], strides = [1, 1]} : vector<8x8xf32> to vector<8x1xf32>
    %29 = vector.extract_strided_slice %6 {offsets = [0, 2], sizes = [8, 1], strides = [1, 1]} : vector<8x8xf32> to vector<8x1xf32>
    %30 = vector.shape_cast %28 : vector<8x1xf32> to vector<8x1xf32>
    %31 = vector.broadcast %30 : vector<8x1xf32> to vector<8x128xf32>
    %32 = vector.shape_cast %29 : vector<8x1xf32> to vector<8x1xf32>
    %33 = vector.broadcast %32 : vector<8x1xf32> to vector<8x128xf32>
    %34 = arith.select %27, %31, %33 : vector<8x128xi1>, vector<8x128xf32>
    %35 = vector.extract_strided_slice %5 {offsets = [16, 0], sizes = [8, 128], strides = [1, 1]} : vector<24x128xi1> to vector<8x128xi1>
    %36 = vector.extract_strided_slice %6 {offsets = [0, 4], sizes = [8, 1], strides = [1, 1]} : vector<8x8xf32> to vector<8x1xf32>
    %37 = vector.extract_strided_slice %6 {offsets = [0, 0], sizes = [8, 1], strides = [1, 1]} : vector<8x8xf32> to vector<8x1xf32>
    %38 = vector.shape_cast %36 : vector<8x1xf32> to vector<8x1xf32>
    %39 = vector.broadcast %38 : vector<8x1xf32> to vector<8x128xf32>
    %40 = vector.shape_cast %37 : vector<8x1xf32> to vector<8x1xf32>
    %41 = vector.broadcast %40 : vector<8x1xf32> to vector<8x128xf32>
    %42 = arith.select %35, %39, %41 : vector<8x128xi1>, vector<8x128xf32>
    %43 = arith.select %26, %34, %42 : vector<8x128xi1>, vector<8x128xf32>
    %44 = arith.select %7, %25, %43 : vector<8x128xi1>, vector<8x128xf32>
    %cst_7 = arith.constant dense<0.000000e+00> : vector<128xf32>
    %45 = vector.multi_reduction <add>, %44, %cst_7 [0] : vector<8x128xf32> to vector<128xf32>
    %46 = vector.shape_cast %45 : vector<128xf32> to vector<1x128xf32>
    %c0_8 = arith.constant 0 : index
    %c0_9 = arith.constant 0 : index
    %c0_10 = arith.constant 0 : index
    %47 = vector.load %arg5[%c0_8, %c0_9, %c0_10] : memref<1x1x128xf32, #tpu.memory_space<vmem>>, vector<1x1x128xf32>
    %48 = vector.shape_cast %47 : vector<1x1x128xf32> to vector<1x128xf32>
    %49 = vector.shape_cast %46 : vector<1x128xf32> to vector<1x1x128xf32>
    tpu.vector_store %arg5[%c0_8, %c0_9, %c0_10], %49 {strides = array<i32>} : memref<1x1x128xf32, #tpu.memory_space<vmem>>, vector<1x1x128xf32>,
    return
  }
  func.func @transform_0(%arg0: i32) -> (i32, i32) {
    %c0_i32 = arith.constant 0 : i32
    %c0_i32_0 = arith.constant 0 : i32
    return %arg0, %c0_i32 : i32, i32
  }
  func.func @transform_1(%arg0: i32) -> (i32, i32) {
    %c0_i32 = arith.constant 0 : i32
    %c0_i32_0 = arith.constant 0 : i32
    %c0_i32_1 = arith.constant 0 : i32
    return %c0_i32, %c0_i32_0 : i32, i32
  }
  func.func @transform_2(%arg0: i32) -> (i32, i32) {
    %c0_i32 = arith.constant 0 : i32
    %c0_i32_0 = arith.constant 0 : i32
    %c0_i32_1 = arith.constant 0 : i32
    return %c0_i32, %c0_i32_0 : i32, i32
  }
  func.func @transform_3(%arg0: i32) -> (i32, i32) {
    %c0_i32 = arith.constant 0 : i32
    %c0_i32_0 = arith.constant 0 : i32
    %c0_i32_1 = arith.constant 0 : i32
    return %c0_i32, %c0_i32_0 : i32, i32
  }
  func.func @transform_4(%arg0: i32) -> (i32, i32, i32) {
    %c0_i32 = arith.constant 0 : i32
    %c0_i32_0 = arith.constant 0 : i32
    %c0_i32_1 = arith.constant 0 : i32
    return %arg0, %c0_i32, %c0_i32_0 : i32, i32, i32
  }
}

</mosaic_0001>

<llo_original>
// kernel: tpu_custom_call.1
$region0: #{tpu_custom_call.1}
  #allocation0 [shape = 'u32[]', space=smem, size = 0x4, offset = 0x4, fixed_abs, tag = 'smem constant byte address 0x4 - core index']
  #allocation1 [shape = 'u32[72,128]{1,0:T(1,128)}', space=vmem, size = 0x9000, scoped, tag = 'internal scratch']
  %s0 = inlined_call_operand.vmem [shape: f32[200,32], index: 0, kind: input, shape index: {}]
  %s1 = inlined_call_operand.vmem [shape: f32[24,32], index: 1, kind: input, shape index: {}]
  %s2 = inlined_call_operand.vmem [shape: f32[24,1], index: 2, kind: input, shape index: {}]
  %s3 = inlined_call_operand.vmem [shape: f32[8,8], index: 3, kind: input, shape index: {}]
  %s4 = inlined_call_operand.hbm [shape: f32[2,1,128], index: 4, kind: output, shape index: {}]
  %s5 = sld [smem:[#allocation0]]
  $region49: #{tpu_custom_call.1} parent=0
    _
  %s7 = ssub.s32 1, %s5
  %s8 = scalar_select 0, %s7, %s5
  $region1: #{tpu_custom_call.1} parent=0
    #allocation2 [shape = 'u8[1024]{0}', space=vmem, size = 0x400, scoped, tag = 'output window, operand 0']
    #allocation3 [shape = 's32[2]{0}', space=sflag, size = 0x8, scoped, tag = 'scoped memory for tpu_custom_call.1']
    %9 = vsyncpa [#allocation3], 0
    %s10 = scalar_lea.sflag [#allocation3], 1
    %11 = vsyncpa %s10, 0
    loop: start=0, step=1, limit=4
    $region2: #{tpu_custom_call.1} parent=1 // loop_pre_header
      _
    $region3: #{tpu_custom_call.1} parent=1 // loop_header
      %s13 = sphi 0, %s17
      %p14 = scmp.ge.s32.totalorder %s13, 4
      %s23 = sphi 0, %s25
      %s26 = sphi 0, %s23
      %s27 = sphi 0, %s26
      %s43 = sphi 0, %s27
      %s47 = sphi 0, %s47
      %s49 = sphi 0, %s47
      %s50 = sphi 0, %s49
      %s64 = sphi 0, %s50
      %s68 = sphi 0, %s68
      %s70 = sphi 0, %s68
      %s71 = sphi 0, %s70
      %s85 = sphi 0, %s71
      %s89 = sphi 0, %s89
      %s91 = sphi 0, %s89
      %s92 = sphi 0, %s91
      %s106 = sphi 0, %s92
      %s112 = sphi 0, %s114
      %s115 = sphi 0, %s112
      %s116 = sphi 0, %s115
      %s132 = sphi 0, %s116
    $region4: #{tpu_custom_call.1} parent=1 // loop_header_branch
      %16 = sbr.rel (%p14) target = $region8
    $region5: #{tpu_custom_call.1} parent=1 // loop_body
      %s18 = ssub.s32 %s13, 1
      %s19 = ssub.s32 %s13, 2
      %s20 = sadd.s32 %s13, 1
      %s21 = ssub.s32 %s13, %s20
      %p22 = scmp.eq.s32.totalorder %s21, 0
      %s24 = sadd.s32 %s23, 1
      %s25 = scalar_select %p22, %s23, %s24
      %p28 = pneg %p22
      %p29 = scmp.eq.s32.totalorder %s13, 1
      %p30 = por %p28, %p29
      %p31 = scmp.ne.s32.totalorder %s23, %s26
      %p32 = scmp.eq.s32.totalorder %s13, 0
      %p33 = por %p31, %p32
      %p34 = scmp.ne.s32.totalorder %s23, %s26
      %p35 = scmp.eq.s32.totalorder %s18, 1
      %p36 = por %p34, %p35
      %p37 = scmp.ne.s32.totalorder %s26, %s27
      %p38 = scmp.eq.s32.totalorder %s18, 0
      %p39 = por %p37, %p38
      %p40 = scmp.ne.s32.totalorder %s26, %s27
      %p41 = scmp.eq.s32.totalorder %s19, 1
      %p42 = por %p40, %p41
      %p44 = scmp.ne.s32.totalorder %s27, %s43
      %p45 = scmp.eq.s32.totalorder %s19, 0
      %p46 = por %p44, %p45
      %s48 = sadd.s32 %s47, 1
      %p51 = scmp.eq.s32.totalorder %s13, 1
      %p52 = scmp.ne.s32.totalorder %s47, %s49
      %p53 = scmp.eq.s32.totalorder %s13, 0
      %p54 = por %p52, %p53
      %p55 = scmp.ne.s32.totalorder %s47, %s49
      %p56 = scmp.eq.s32.totalorder %s18, 1
      %p57 = por %p55, %p56
      %p58 = scmp.ne.s32.totalorder %s49, %s50
      %p59 = scmp.eq.s32.totalorder %s18, 0
      %p60 = por %p58, %p59
      %p61 = scmp.ne.s32.totalorder %s49, %s50
      %p62 = scmp.eq.s32.totalorder %s19, 1
      %p63 = por %p61, %p62
      %p65 = scmp.ne.s32.totalorder %s50, %s64
      %p66 = scmp.eq.s32.totalorder %s19, 0
      %p67 = por %p65, %p66
      %s69 = sadd.s32 %s68, 1
      %p72 = scmp.eq.s32.totalorder %s13, 1
      %p73 = scmp.ne.s32.totalorder %s68, %s70
      %p74 = scmp.eq.s32.totalorder %s13, 0
      %p75 = por %p73, %p74
      %p76 = scmp.ne.s32.totalorder %s68, %s70
      %p77 = scmp.eq.s32.totalorder %s18, 1
      %p78 = por %p76, %p77
      %p79 = scmp.ne.s32.totalorder %s70, %s71
      %p80 = scmp.eq.s32.totalorder %s18, 0
      %p81 = por %p79, %p80
      %p82 = scmp.ne.s32.totalorder %s70, %s71
      %p83 = scmp.eq.s32.totalorder %s19, 1
      %p84 = por %p82, %p83
      %p86 = scmp.ne.s32.totalorder %s71, %s85
      %p87 = scmp.eq.s32.totalorder %s19, 0
      %p88 = por %p86, %p87
      %s90 = sadd.s32 %s89, 1
      %p93 = scmp.eq.s32.totalorder %s13, 1
      %p94 = scmp.ne.s32.totalorder %s89, %s91
      %p95 = scmp.eq.s32.totalorder %s13, 0
      %p96 = por %p94, %p95
      %p97 = scmp.ne.s32.totalorder %s89, %s91
      %p98 = scmp.eq.s32.totalorder %s18, 1
      %p99 = por %p97, %p98
      %p100 = scmp.ne.s32.totalorder %s91, %s92
      %p101 = scmp.eq.s32.totalorder %s18, 0
      %p102 = por %p100, %p101
      %p103 = scmp.ne.s32.totalorder %s91, %s92
      %p104 = scmp.eq.s32.totalorder %s19, 1
      %p105 = por %p103, %p104
      %p107 = scmp.ne.s32.totalorder %s92, %s106
      %p108 = scmp.eq.s32.totalorder %s19, 0
      %p109 = por %p107, %p108
      %s110 = ssub.s32 %s13, %s20
      %p111 = scmp.eq.s32.totalorder %s110, 0
      %s113 = sadd.s32 %s112, 1
      %s114 = scalar_select %p111, %s112, %s113
      %p117 = pneg %p111
      %p118 = scmp.eq.s32.totalorder %s13, 1
      %p119 = por %p117, %p118
      %p120 = scmp.ne.s32.totalorder %s112, %s115
      %p121 = scmp.eq.s32.totalorder %s13, 0
      %p122 = por %p120, %p121
      %p123 = scmp.ne.s32.totalorder %s112, %s115
      %p124 = scmp.eq.s32.totalorder %s18, 1
      %p125 = por %p123, %p124
      %p126 = scmp.ne.s32.totalorder %s115, %s116
      %p127 = scmp.eq.s32.totalorder %s18, 0
      %p128 = por %p126, %p127
      %p129 = scmp.ne.s32.totalorder %s115, %s116
      %p130 = scmp.eq.s32.totalorder %s19, 1
      %p131 = por %p129, %p130
      %p133 = scmp.ne.s32.totalorder %s116, %s132
      %p134 = scmp.eq.s32.totalorder %s19, 0
      %p135 = por %p133, %p134
      %p136 = scmp.le.s32.totalorder 1, %s13
      %p137 = scmp.lt.s32.totalorder %s13, 3
      %p138 = pnand %p136, %p137
      %p139 = pneg %p138
      // Predicated region
      $region9: #{tpu_custom_call.1} parent=5 // pred_check
        _
      $region10: #{tpu_custom_call.1} parent=5 // pred_check_branch
        %141 = sbr.rel (%p138) target = $region12
      $region11: #{tpu_custom_call.1} parent=5 // pred_region
        %s142 = ssub.s32 %s13, 1
        // Predicated region
        $region13: #{tpu_custom_call.1} parent=11 // pred_check
          %p143 = pneg %p60
        $region14: #{tpu_custom_call.1} parent=11 // pred_check_branch
          %145 = sbr.rel (%p143) target = $region16
        $region15: #{tpu_custom_call.1} parent=11 // pred_region
          _
        $region16: #{tpu_custom_call.1} parent=11 // pred_fallthru
          _
        // Predicated region
        $region17: #{tpu_custom_call.1} parent=11 // pred_check
          %p146 = pneg %p81
        $region18: #{tpu_custom_call.1} parent=11 // pred_check_branch
          %148 = sbr.rel (%p146) target = $region20
        $region19: #{tpu_custom_call.1} parent=11 // pred_region
          _
        $region20: #{tpu_custom_call.1} parent=11 // pred_fallthru
          _
        // Predicated region
        $region21: #{tpu_custom_call.1} parent=11 // pred_check
          %p149 = pneg %p102
        $region22: #{tpu_custom_call.1} parent=11 // pred_check_branch
          %151 = sbr.rel (%p149) target = $region24
        $region23: #{tpu_custom_call.1} parent=11 // pred_region
          _
        $region24: #{tpu_custom_call.1} parent=11 // pred_fallthru
          _
      $region12: #{tpu_custom_call.1} parent=5 // pred_fallthru
        _
      %p152 = scmp.lt.s32.totalorder %s13, 2
      // Predicated region
      $region25: #{tpu_custom_call.1} parent=5 // pred_check
        %p153 = pneg %p152
      $region26: #{tpu_custom_call.1} parent=5 // pred_check_branch
        %155 = sbr.rel (%p153) target = $region28
      $region27: #{tpu_custom_call.1} parent=5 // pred_region
        // Predicated region
        $region29: #{tpu_custom_call.1} parent=27 // pred_check
          %p156 = pneg %p33
        $region30: #{tpu_custom_call.1} parent=27 // pred_check_branch
          %158 = sbr.rel (%p156) target = $region32
        $region31: #{tpu_custom_call.1} parent=27 // pred_region
          %s159 = smul.u32 16, %s13
          %s160 = ssub.s32 25, %s159
          %p161 = scmp.lt.s32.totalorder %s160, 16
          %s162 = scalar_select %p161, %s160, 16
          %s163 = smul.u32 8, %s162
          %p164 = scmp.lt.s32.totalorder %s159, 24
          %s165 = scalar_select %p164, %s159, 24
          %s166 = smul.addr %s165, 8
          %s167 = scalar_lea.vmem %s0, %s166
          %s168 = smul.u32 16, %s13
          %s169 = ssub.s32 25, %s168
          %p170 = scmp.lt.s32.totalorder %s169, 16
          %s171 = scalar_select %p170, %s169, 16
          %s172 = smul.u32 8, %s171
        $region32: #{tpu_custom_call.1} parent=27 // pred_fallthru
          _
      $region28: #{tpu_custom_call.1} parent=5 // pred_fallthru
        _
      %p173 = scmp.le.s32.totalorder 1, %s13
      %p174 = scmp.lt.s32.totalorder %s13, 3
      %p175 = pnand %p173, %p174
      %p176 = pneg %p175
      // Predicated region
      $region33: #{tpu_custom_call.1} parent=5 // pred_check
        _
      $region34: #{tpu_custom_call.1} parent=5 // pred_check_branch
        %178 = sbr.rel (%p175) target = $region36
      $region35: #{tpu_custom_call.1} parent=5 // pred_region
        %s179 = ssub.s32 %s13, 1
        %s180 = smul.u32 16, %s18
        %s181 = ssub.s32 25, %s180
        %p182 = scmp.lt.s32.totalorder %s181, 16
        %s183 = scalar_select %p182, %s181, 16
        %s184 = smul.u32 8, %s183
        %p185 = scmp.lt.s32.totalorder %s180, 24
        %s186 = scalar_select %p185, %s180, 24
        %s187 = smul.addr %s186, 8
        %s188 = scalar_lea.vmem %s0, %s187
        %p189 = pneg %p39
        %p190 = pneg %p36
        %p191 = pneg %p60
        %p192 = pneg %p57
        %p193 = pneg %p81
        %p194 = pneg %p78
        %p195 = pneg %p102
        %p196 = pneg %p99
        %p197 = pneg %p128
        %p198 = pneg %p125
        %s199 = sand.u32 %s115, 1
        %s200 = scalar_lea.sflag [#allocation3], %s199
        %s201 = sand.u32 %s115, 1
        %s202 = scalar_lea.vmem [#allocation2], %s201
        %s203 = smul.u32 16, %s18
        %s204 = ssub.s32 25, %s203
        %p205 = scmp.lt.s32.totalorder %s204, 16
        %s206 = scalar_select %p205, %s204, 16
        %s207 = smul.u32 8, %s206
        %p208 = scmp.lt.s32.totalorder %s203, 24
        %s209 = scalar_select %p208, %s203, 24
        %s210 = smul.addr %s209, 8
        %s211 = scalar_lea.vmem %s0, %s210
        %s212 = smul.u32 16, %s18
        %s213 = ssub.s32 25, %s212
        %p214 = scmp.lt.s32.totalorder %s213, 16
        %s215 = scalar_select %p214, %s213, 16
        %s216 = smul.u32 8, %s215
        %v217 = vld [vmem:[%s211] sm:$0xff]
        %v218 = vld [vmem:[%s211 + $0x8] sm:$0xff]
        %v219 = vld [vmem:[%s211 + $0x10] sm:$0xff]
        %v220 = vld [vmem:[%s211 + $0x18] sm:$0xff]
        %v221 = vld [vmem:[%s211 + $0x20] sm:$0xff]
        %v222 = vld [vmem:[%s211 + $0x28] sm:$0xff]
        %v223 = vld [vmem:[%s211 + $0x30] sm:$0xff]
        %v224 = vld [vmem:[%s211 + $0x38] sm:$0xff]
        %v225 = vld [vmem:[%s211 + $0x40] sm:$0xff]
        %v226 = vld [vmem:[%s211 + $0x48] sm:$0xff]
        %v227 = vld [vmem:[%s211 + $0x50] sm:$0xff]
        %v228 = vld [vmem:[%s211 + $0x58] sm:$0xff]
        %v229 = vld [vmem:[%s211 + $0x60] sm:$0xff]
        %v230 = vld [vmem:[%s211 + $0x68] sm:$0xff]
        %v231 = vld [vmem:[%s211 + $0x70] sm:$0xff]
        %v232 = vld [vmem:[%s211 + $0x78] sm:$0xff]
        %v233 = vld [vmem:[%s1] sm:$0xff]
        %v234 = vld [vmem:[%s1 + $0x8] sm:$0xff]
        %v235 = vld [vmem:[%s1 + $0x10] sm:$0xff]
        %vm236 = vcmask 261120
        %v238 = vsel %vm236, %v233, 0
        %v241 = vsel %vm236, %v234, 0
        %v244 = vsel %vm236, %v235, 0
        %v247 = vsel %vm236, %v217, 0
        %v250 = vsel %vm236, %v218, 0
        %v253 = vsel %vm236, %v219, 0
        %v256 = vsel %vm236, %v220, 0
        %v259 = vsel %vm236, %v221, 0
        %v262 = vsel %vm236, %v222, 0
        %v265 = vsel %vm236, %v223, 0
        %v268 = vsel %vm236, %v224, 0
        %v271 = vsel %vm236, %v225, 0
        %v274 = vsel %vm236, %v226, 0
        %v277 = vsel %vm236, %v227, 0
        %v280 = vsel %vm236, %v228, 0
        %v283 = vsel %vm236, %v229, 0
        %v286 = vsel %vm236, %v230, 0
        %v289 = vsel %vm236, %v231, 0
        %v292 = vsel %vm236, %v232, 0
        %294 = vmatpush.xpose.msra.mxu0 %v292
        %295 = vmatpush.xpose.msra.mxu0 %v289
        %296 = vmatpush.xpose.msra.mxu0 %v286
        %297 = vmatpush.xpose.msra.mxu0 %v283
        %298 = vmatpush.xpose.msra.mxu0 %v280
        %299 = vmatpush.xpose.msra.mxu0 %v277
        %300 = vmatpush.xpose.msra.mxu0 %v274
        %301 = vmatpush.xpose.msra.mxu0 %v271
        %302 = vmatpush.xpose.msra.mxu0 %v268
        %303 = vmatpush.xpose.msra.mxu0 %v265
        %304 = vmatpush.xpose.msra.mxu0 %v262
        %305 = vmatpush.xpose.msra.mxu0 %v259
        %306 = vmatpush.xpose.msra.mxu0 %v256
        %307 = vmatpush.xpose.msra.mxu0 %v253
        %308 = vmatpush.xpose.msra.mxu0 %v250
        %309 = vmatpush.xpose.msra.mxu0 %v247
        %310 = vmatmul.f32.gmra.mxu0 %v238
        %v311 = vpop.f32.mrf.mxu0
        %v312 = vadd.f32 0.0, %v311
        %313 = vmatmul.f32.gmra.mxu0 %v241
        %v314 = vpop.f32.mrf.mxu0
        %v315 = vadd.f32 0.0, %v314
        %316 = vmatmul.f32.gmra.mxu0 %v244
        %v317 = vpop.f32.mrf.mxu0
        %v318 = vadd.f32 0.0, %v317
        %319 = vdwg.mxu0
        %v320 = vld [vmem:[%s2] sm:$0xff]
        %v321 = vld [vmem:[%s2 + $0x8] sm:$0xff]
        %v322 = vld [vmem:[%s2 + $0x10] sm:$0xff]
        %324 = vset.pattern.permute.xlu0 0
        %325 = vperm.xlu0 %324, %v320
        %v326 = vpop.permute.xlu0 %325
        %329 = vset.pattern.permute.xlu0 0
        %330 = vperm.xlu0 %329, %v321
        %v331 = vpop.permute.xlu0 %330
        %334 = vset.pattern.permute.xlu0 0
        %335 = vperm.xlu0 %334, %v322
        %v336 = vpop.permute.xlu0 %335
        %vm338 = vcmp.gt.f32.partialorder %v312, %v326
        %vm339 = vcmp.gt.f32.partialorder %v315, %v331
        %vm340 = vcmp.gt.f32.partialorder %v318, %v336
        %v341 = vld [vmem:[%s3] sm:$0xff]
        %343 = vset.pattern.permute.xlu0 7
        %344 = vperm.xlu0 %343, %v341
        %v345 = vpop.permute.xlu0 %344
        %347 = vset.pattern.permute.xlu0 3
        %348 = vperm.xlu0 %347, %v341
        %v349 = vpop.permute.xlu0 %348
        %v351 = vsel %vm340, %v345, %v349
        %352 = vset.pattern.permute.xlu0 5
        %353 = vperm.xlu0 %352, %v341
        %v354 = vpop.permute.xlu0 %353
        %356 = vset.pattern.permute.xlu0 1
        %357 = vperm.xlu0 %356, %v341
        %v358 = vpop.permute.xlu0 %357
        %v360 = vsel %vm340, %v354, %v358
        %v361 = vsel %vm339, %v351, %v360
        %362 = vset.pattern.permute.xlu0 6
        %363 = vperm.xlu0 %362, %v341
        %v364 = vpop.permute.xlu0 %363
        %366 = vset.pattern.permute.xlu0 2
        %367 = vperm.xlu0 %366, %v341
        %v368 = vpop.permute.xlu0 %367
        %v370 = vsel %vm340, %v364, %v368
        %371 = vset.pattern.permute.xlu0 4
        %372 = vperm.xlu0 %371, %v341
        %v373 = vpop.permute.xlu0 %372
        %375 = vset.pattern.permute.xlu0 0
        %376 = vperm.xlu0 %375, %v341
        %v377 = vpop.permute.xlu0 %376
        %v379 = vsel %vm340, %v373, %v377
        %v380 = vsel %vm339, %v370, %v379
        %v381 = vsel %vm338, %v361, %v380
        %v382 = vrot.slane %v381, 4
        %v383 = vadd.f32 %v381, %v382
        %v384 = vrot.slane %v383, 2
        %v385 = vadd.f32 %v383, %v384
        %v386 = vrot.slane %v385, 1
        %v387 = vadd.f32 %v385, %v386
        %388 = vst [vmem:[%s202] sm:$0x1] %v387
        %s389 = sand.u32 %s115, 1
        %s390 = scalar_lea.sflag [#allocation3], %s389
        %s391 = sand.u32 %s115, 1
        %s392 = scalar_lea.vmem [#allocation2], %s391
        // Predicated region
        $region37: #{tpu_custom_call.1} parent=35 // pred_check
          %p393 = pneg %p125
        $region38: #{tpu_custom_call.1} parent=35 // pred_check_branch
          %395 = sbr.rel (%p393) target = $region40
        $region39: #{tpu_custom_call.1} parent=35 // pred_region
          %397 = vsyncadd %s390, 0
          %s398 = scalar_lea.hbm %s4, %s18
          %s400 = sshll.u32 %s392, 4
          %s401 = int_to_ptr.vmem [resolvable:$true] %s400
          %s402 = sshll.u32 %s398, 4
          %s403 = int_to_ptr.hbm [resolvable:$true] %s402
          %405 = dma.vmem_to_hbm [thread:$0]  %s401, 16, %s403, %s390
        $region40: #{tpu_custom_call.1} parent=35 // pred_fallthru
          _
      $region36: #{tpu_custom_call.1} parent=5 // pred_fallthru
        _
      %p406 = scmp.le.s32.totalorder 2, %s13
      // Predicated region
      $region41: #{tpu_custom_call.1} parent=5 // pred_check
        %p407 = pneg %p406
      $region42: #{tpu_custom_call.1} parent=5 // pred_check_branch
        %409 = sbr.rel (%p407) target = $region44
      $region43: #{tpu_custom_call.1} parent=5 // pred_region
        %s410 = ssub.s32 %s13, 2
        // Predicated region
        $region45: #{tpu_custom_call.1} parent=43 // pred_check
          %p411 = pneg %p131
        $region46: #{tpu_custom_call.1} parent=43 // pred_check_branch
          %413 = sbr.rel (%p411) target = $region48
        $region47: #{tpu_custom_call.1} parent=43 // pred_region
          %s414 = sand.u32 %s116, 1
          %s415 = scalar_lea.sflag [#allocation3], %s414
          %s416 = sand.u32 %s116, 1
          %s417 = scalar_lea.vmem [#allocation2], %s416
          %419 = dma.done %s415, 16
        $region48: #{tpu_custom_call.1} parent=43 // pred_fallthru
          _
      $region44: #{tpu_custom_call.1} parent=5 // pred_fallthru
        _
    $region6: #{tpu_custom_call.1} parent=1 // loop_footer
      %s17 = sadd.s32 1, %s13
    $region7: #{tpu_custom_call.1} parent=1 // loop_footer_branch
      %12 = sbr.rel target = $region3
    $region8: #{tpu_custom_call.1} parent=1 // loop_exit
      _
    %420 = vsyncpa [#allocation3], 1
    %s421 = scalar_lea.sflag [#allocation3], 1
    %422 = vsyncpa %s421, 1

</llo_original>
